<compile_context>
chip_gen: v7x
topology: tpu7x:2x2x1
jax: 0.10.0
libtpu: 0.0.40
codegen_flags: <defaults>
</compile_context>

<pallas_src>
import functools

import numpy as np
import jax
import jax.numpy as jnp
from jax.experimental import pallas as pl
from jax.experimental.pallas import tpu as pltpu


# ---------------------------------------------------------------------------
# Interpolation weights (exact torch bilinear, align_corners=False)
# ---------------------------------------------------------------------------
def _interp_matrix_np(out_size, in_size):
    """Row-interpolation matrix matching torch bilinear, align_corners=False."""
    o = np.arange(out_size, dtype=np.float64)
    src = (o + 0.5) * (in_size / out_size) - 0.5
    src = np.maximum(src, 0.0)
    i0 = np.minimum(np.floor(src).astype(np.int64), in_size - 1)
    i1 = np.minimum(i0 + 1, in_size - 1)
    w1 = src - i0
    w0 = 1.0 - w1
    mat = np.zeros((out_size, in_size), dtype=np.float64)
    mat[np.arange(out_size), i0] += w0
    mat[np.arange(out_size), i1] += w1
    return mat


def _kron_matrix_np(in_h, in_w, out_h, out_w):
    """Combined separable-bilinear matrix M (h*w, H*W):
    out_flat = x_flat @ M  with row-major (h,w)/(H,W) flattening."""
    a = _interp_matrix_np(out_h, in_h)            # (H, h)
    b = _interp_matrix_np(out_w, in_w)            # (W, w)
    return np.ascontiguousarray(np.kron(a, b).T)  # (h*w, H*W)


# ---------------------------------------------------------------------------
# VMEM budgeting (padded (8,128) bytes, per-generation capacity)
# ---------------------------------------------------------------------------
def _round_up(x, m):
    return (x + m - 1) // m * m


def _padded_tile_bytes(shape, dtype):
    """Approx VMEM bytes of a block: last dim padded to 128 lanes, 2nd-to-last
    padded to the sublane multiple (8 for 32-bit, 16 for 16-bit, ...)."""
    itemsize = int(np.dtype(dtype).itemsize)
    sub = 8 * (4 // max(itemsize, 1))
    shape = tuple(int(s) for s in shape)
    if len(shape) == 0:
        return 4
    if len(shape) == 1:
        return _round_up(shape[0], 128) * itemsize
    lead = int(np.prod(shape[:-2])) if len(shape) > 2 else 1
    return lead * _round_up(shape[-2], sub) * _round_up(shape[-1], 128) * itemsize


def _vmem_limit_bytes():
    cap = 64 * 1024 * 1024                       # v7x per-TC (smallest gen)
    try:
        cap = int(pltpu.get_tpu_info().vmem_capacity_bytes)
    except Exception:
        pass
    return int(min(cap, 128 * 1024 * 1024) - 8 * 1024 * 1024)


# ---------------------------------------------------------------------------
# Fused path: one kernel resizes every scale and writes its channel slice
# ---------------------------------------------------------------------------
def _fused_agg_kernel(*refs, num_scales, scale_meta):
    """refs = (x_0, ..., x_{S-1}, M_0, ..., M_{R-1}, out).

    x_s  : (1, C_s, h_s*w_s)            (identity scale: (1, C_s, tile_hw))
    M_r  : (h_s*w_s, tile_hw)           combined (kron) interpolation matrix
    out  : (1, C_total, tile_hw)        each scale writes rows [c0, c0+C_s)
    """
    out_ref = refs[-1]
    x_refs = refs[:num_scales]
    m_refs = refs[num_scales:-1]
    for s in range(num_scales):
        c0, cs, m_idx = scale_meta[s]
        x = x_refs[s][0]                                  # (C_s, K)
        if m_idx is None:
            # Resize to own size (align_corners=False) is an exact identity.
            out_ref[0, c0:c0 + cs, :] = x.astype(out_ref.dtype)
        else:
            y = jnp.dot(x, m_refs[m_idx][...],
                        preferred_element_type=jnp.float32)
            out_ref[0, c0:c0 + cs, :] = y.astype(out_ref.dtype)


def _aggregate_fused(inputs, tgt_h, tgt_w, vmem_limit, budget):
    """Single pallas_call producing the concatenated output. Returns None when
    the combined (kron) matrices are too large (fall back to separable)."""
    n = int(inputs[0].shape[0])
    dtype = inputs[0].dtype
    itemsize = int(np.dtype(dtype).itemsize)
    mat_dtype = dtype if itemsize < 4 else jnp.float32
    mat_itemsize = int(np.dtype(mat_dtype).itemsize)
    hw_out = tgt_h * tgt_w
    c_total = sum(int(x.shape[1]) for x in inputs)

    # --- per-scale metadata -------------------------------------------------
    scale_meta = []            # (channel_base, C_s, kron_index_or_None)
    resize_hw = []             # (h, w) for scales that need a resize
    c0 = 0
    for x in inputs:
        _, cs, h, w = map(int, x.shape)
        if (h, w) == (tgt_h, tgt_w):
            scale_meta.append((c0, cs, None))
        else:
            scale_meta.append((c0, cs, len(resize_hw)))
            resize_hw.append((h, w))
        c0 += cs
    scale_meta = tuple(scale_meta)

    # kron matrices are streamed from HBM and held (column-tiled) in VMEM;
    # only use this path when their total footprint is a few MiB at most.
    kron_bytes = sum(h * w * hw_out * mat_itemsize for (h, w) in resize_hw)
    if kron_bytes > min(8 << 20, budget // 2):
        return None

    # --- spatial (lane-axis) tile: biggest that fits padded VMEM budget; ----
    #     prefer >= 2 grid steps so "parallel" can shard across v7x's 2 TCs.
    def step_bytes(tile_hw):
        tot = 2 * _padded_tile_bytes((c_total, tile_hw), dtype)        # out
        for x, (_, cs, m_idx) in zip(inputs, scale_meta):
            h, w = int(x.shape[2]), int(x.shape[3])
            if m_idx is None:
                tot += 2 * _padded_tile_bytes((cs, tile_hw), dtype)    # copy in
            else:
                tot += 2 * _padded_tile_bytes((cs, h * w), dtype)      # x in
                tot += 2 * _padded_tile_bytes((h * w, tile_hw), mat_dtype)
                tot += _padded_tile_bytes((cs, tile_hw), jnp.float32)  # f32 acc
        return tot

    candidates = [hw_out]
    t = hw_out
    while t % 2 == 0 and (t // 2) % 128 == 0:
        t //= 2
        candidates.append(t)                      # multiples of 128, descending

    tile_hw = None
    for cand in candidates:
        if step_bytes(cand) <= budget:
            tile_hw = cand
            break
    if tile_hw is None:
        return None
    if n * (hw_out // tile_hw) < 2:               # give megacore >= 2 steps
        for cand in candidates:
            if cand < tile_hw and step_bytes(cand) <= budget:
                tile_hw = cand
                break

    num_hw_tiles = hw_out // tile_hw
    grid = (n, num_hw_tiles)

    # --- build operands & specs ----------------------------------------------
    mats = [jnp.asarray(_kron_matrix_np(h, w, tgt_h, tgt_w), dtype=mat_dtype)
            for (h, w) in resize_hw]

    flat_inputs = []
    in_specs = []
    for x, (_, cs, m_idx) in zip(inputs, scale_meta):
        _, _, h, w = map(int, x.shape)
        flat_inputs.append(x.reshape(n, cs, h * w))        # contiguous: free
        if m_idx is None:
            in_specs.append(pl.BlockSpec((1, cs, tile_hw),
                                         lambda i, j: (i, 0, j)))
        else:
            in_specs.append(pl.BlockSpec((1, cs, h * w),
                                         lambda i, j: (i, 0, 0)))
    for (h, w) in resize_hw:
        in_specs.append(pl.BlockSpec((h * w, tile_hw), lambda i, j: (0, j)))

    out = pl.pallas_call(
        functools.partial(_fused_agg_kernel, num_scales=len(inputs),
                          scale_meta=scale_meta),
        out_shape=jax.ShapeDtypeStruct((n, c_total, hw_out), dtype),
        grid_spec=pltpu.PrefetchScalarGridSpec(
            num_scalar_prefetch=0,
            grid=grid,
            in_specs=in_specs,
            out_specs=pl.BlockSpec((1, c_total, tile_hw),
                                   lambda i, j: (i, 0, j)),
        ),
        compiler_params=pltpu.CompilerParams(
            dimension_semantics=("parallel", "parallel"),
            vmem_limit_bytes=vmem_limit,
        ),
    )(*flat_inputs, *mats)
    return out.reshape(n, c_total, tgt_h, tgt_w)


# ---------------------------------------------------------------------------
# Separable fallback (large feature maps): per-scale resize, then concat
# ---------------------------------------------------------------------------
def _resize_kernel_separable(x_ref, a_ref, bt_ref, o_ref, *, flat_w_matmul):
    """out[t, H, W] = sum_{h,w} A[H, h] * x[t, h, w] * B[W, w]."""
    t, h, w = x_ref.shape
    big_h = a_ref.shape[0]
    big_w = bt_ref.shape[1]
    x = x_ref[...]

    if flat_w_matmul:
        # W-pass as one dense MXU matmul over every row of the tile
        # (h is sublane-aligned so the reshapes are layout no-ops).
        y = jnp.dot(x.reshape(t * h, w), bt_ref[...],
                    preferred_element_type=jnp.float32).reshape(t, h, big_w)
    else:
        bt_b = jnp.broadcast_to(bt_ref[...][None], (t, w, big_w))
        y = jnp.einsum('thw,twW->thW', x, bt_b,
                       preferred_element_type=jnp.float32)

    # H-pass: tile-local batched matmul (broadcast bounded to the tile).
    # TODO(synk): replace with a two-tap VPU form (2 muls + 1 add per output
    # row) to avoid materializing A per tile.
    a_b = jnp.broadcast_to(a_ref[...][None].astype(jnp.float32), (t, big_h, h))
    out = jnp.einsum('tHh,thW->tHW', a_b, y, preferred_element_type=jnp.float32)
    o_ref[...] = out.astype(o_ref.dtype)


def _resize_separable(x, out_h, out_w, *, vmem_limit=None, budget=None):
    n, c, h, w = map(int, x.shape)
    if (h, w) == (out_h, out_w):
        return x
    if vmem_limit is None:
        vmem_limit = _vmem_limit_bytes()
    if budget is None:
        budget = int(vmem_limit * 0.85)

    dtype = x.dtype
    itemsize = int(np.dtype(dtype).itemsize)
    mat_dtype = dtype if itemsize < 4 else jnp.float32
    sub = 8 * (4 // max(itemsize, 1))

    a = jnp.asarray(_interp_matrix_np(out_h, h), dtype=mat_dtype)          # (H, h)
    bt = jnp.asarray(_interp_matrix_np(out_w, w).T.copy(), dtype=mat_dtype)  # (w, W)

    nc = n * c
    x3 = x.reshape(nc, h, w)                       # contiguous: free reshape

    # Padded-(8,128) VMEM bytes per image in the tile, x2 for double buffering
    # on the pipelined blocks, plus f32 intermediates / broadcast copies.
    per_img = (2 * _padded_tile_bytes((h, w), dtype)
               + _padded_tile_bytes((h, out_w), jnp.float32)
               + _padded_tile_bytes((out_h, h), jnp.float32)
               + _padded_tile_bytes((out_h, out_w), jnp.float32)
               + 2 * _padded_tile_bytes((out_h, out_w), dtype))
    fixed = 2 * (_padded_tile_bytes(a.shape, mat_dtype)
                 + _padded_tile_bytes(bt.shape, mat_dtype))
    tile = int(max(1, min(nc, (budget - fixed) // max(per_img, 1))))
    if nc >= 2:
        tile = min(tile, max(1, nc // 2))          # >= 2 grid steps (megacore)
    while nc % tile:                               # avoid a padded last block
        tile -= 1
    grid = (pl.cdiv(nc, tile),)

    kern = functools.partial(_resize_kernel_separable,
                             flat_w_matmul=(h % sub == 0))
    out = pl.pallas_call(
        kern,
        out_shape=jax.ShapeDtypeStruct((nc, out_h, out_w), dtype),
        grid_spec=pltpu.PrefetchScalarGridSpec(
            num_scalar_prefetch=0,
            grid=grid,
            in_specs=[
                pl.BlockSpec((tile, h, w), lambda i: (i, 0, 0)),
                pl.BlockSpec((out_h, h), lambda i: (0, 0)),
                pl.BlockSpec((w, out_w), lambda i: (0, 0)),
            ],
            out_specs=pl.BlockSpec((tile, out_h, out_w), lambda i: (i, 0, 0)),
        ),
        compiler_params=pltpu.CompilerParams(
            dimension_semantics=("parallel",),
            vmem_limit_bytes=vmem_limit,
        ),
    )(x3, a, bt)
    return out.reshape(n, c, out_h, out_w)


# ---------------------------------------------------------------------------
# Module wrapper
# ---------------------------------------------------------------------------
def aggregate(inputs):
    inputs = [jnp.asarray(x) for x in inputs]
    tgt_h, tgt_w = int(inputs[0].shape[2]), int(inputs[0].shape[3])
    vmem_limit = _vmem_limit_bytes()
    budget = int(vmem_limit * 0.85)

    fused = _aggregate_fused(inputs, tgt_h, tgt_w, vmem_limit, budget)
    if fused is not None:
        return fused

    # Large feature maps: separable per-scale resize, then concat.
    resized = [_resize_separable(x, tgt_h, tgt_w,
                                 vmem_limit=vmem_limit, budget=budget)
               for x in inputs]
    return jnp.concatenate(resized, axis=1)


class PallasHighResolutionMultiscaleAggregator:
    """Pallas port of HighResolutionMultiscaleAggregator.forward."""

    def __call__(self, inputs):
        return aggregate(inputs)


# ---------------------------------------------------------------------------
# Reference + test
# ---------------------------------------------------------------------------
def _reference_resize(x, out_h, out_w):
    """Pure-JAX reference (same torch align_corners=False weights)."""
    n, c, h, w = x.shape
    if (h, w) == (out_h, out_w):
        return x
    a = jnp.asarray(_interp_matrix_np(out_h, h), jnp.float32)
    b = jnp.asarray(_interp_matrix_np(out_w, w), jnp.float32)
    return jnp.einsum('Hh,nchw,Ww->ncHW', a, x, b)


if __name__ == "__main__":
    key = jax.random.PRNGKey(0)
    k0, k1, k2 = jax.random.split(key, 3)

    # three pyramid scales (NCHW), target = highest-resolution branch (16x16)
    x0 = jax.random.normal(k0, (2, 4, 16, 16), jnp.float32)
    x1 = jax.random.normal(k1, (2, 8, 8, 8), jnp.float32)
    x2 = jax.random.normal(k2, (2, 16, 4, 4), jnp.float32)

    model = PallasHighResolutionMultiscaleAggregator()
    out = jax.block_until_ready(model([x0, x1, x2]))

    assert out.shape == (2, 4 + 8 + 16, 16, 16)
    assert bool(jnp.all(jnp.isfinite(out)))
    # highest-resolution branch is an exact passthrough copy
    assert bool(jnp.allclose(out[:, :4], x0))

    ref = jnp.concatenate(
        [_reference_resize(x, 16, 16) for x in (x0, x1, x2)], axis=1)
    max_err = float(jnp.max(jnp.abs(out - ref)))
    assert bool(jnp.allclose(out, ref, atol=1e-4, rtol=1e-4)), max_err

    # Also exercise the separable fallback kernel (used for feature maps too
    # large for the fused kron path).
    r1 = jax.block_until_ready(_resize_separable(x1, 16, 16))
    r2 = jax.block_until_ready(_resize_separable(x2, 16, 16))
    assert bool(jnp.allclose(r1, _reference_resize(x1, 16, 16),
                             atol=1e-4, rtol=1e-4))
    assert bool(jnp.allclose(r2, _reference_resize(x2, 16, 16),
                             atol=1e-4, rtol=1e-4))

    print("KERNEL_OK")
</pallas_src>

<mosaic_0001>
module attributes {stable_mosaic.version = 11 : i64} {
  func.func @_fused_agg_kernel(%arg0: i32, %arg1: i32, %arg2: memref<1x4x256xf32, #tpu.memory_space<vmem>>, %arg3: memref<1x8x64xf32, #tpu.memory_space<vmem>>, %arg4: memref<1x16x16xf32, #tpu.memory_space<vmem>>, %arg5: memref<64x256xf32, #tpu.memory_space<vmem>>, %arg6: memref<16x256xf32, #tpu.memory_space<vmem>>, %arg7: memref<1x28x256xf32, #tpu.memory_space<vmem>>) attributes {dimension_semantics = [#tpu.dimension_semantics<parallel>, #tpu.dimension_semantics<parallel>], iteration_bounds = array<i64: 2, 1>, scalar_prefetch = 0 : i64, scratch_operands = 0 : i64, tpu.core_type = #tpu.core_type<tc>, window_params = [{transform_indices = @transform_0, window_bounds = array<i64: 1, 4, 256>}, {transform_indices = @transform_1, window_bounds = array<i64: 1, 8, 64>}, {transform_indices = @transform_2, window_bounds = array<i64: 1, 16, 16>}, {transform_indices = @transform_3, window_bounds = array<i64: 64, 256>}, {transform_indices = @transform_4, window_bounds = array<i64: 16, 256>}, {transform_indices = @transform_5, window_bounds = array<i64: 1, 28, 256>}]} {
    %c0 = arith.constant 0 : index
    %c0_0 = arith.constant 0 : index
    %c0_1 = arith.constant 0 : index
    %0 = vector.load %arg2[%c0, %c0_0, %c0_1] : memref<1x4x256xf32, #tpu.memory_space<vmem>>, vector<1x4x256xf32>
    %1 = vector.shape_cast %0 : vector<1x4x256xf32> to vector<4x256xf32>
    %c0_2 = arith.constant 0 : index
    %c0_3 = arith.constant 0 : index
    %c0_4 = arith.constant 0 : index
    %2 = vector.load %arg7[%c0_2, %c0_3, %c0_4] : memref<1x28x256xf32, #tpu.memory_space<vmem>>, vector<1x4x256xf32>
    %3 = vector.shape_cast %2 : vector<1x4x256xf32> to vector<4x256xf32>
    %4 = vector.shape_cast %1 : vector<4x256xf32> to vector<1x4x256xf32>
    tpu.vector_store %arg7[%c0_2, %c0_3, %c0_4], %4 {strides = array<i32>} : memref<1x28x256xf32, #tpu.memory_space<vmem>>, vector<1x4x256xf32>,
    %c0_5 = arith.constant 0 : index
    %c0_6 = arith.constant 0 : index
    %c0_7 = arith.constant 0 : index
    %5 = vector.load %arg3[%c0_5, %c0_6, %c0_7] : memref<1x8x64xf32, #tpu.memory_space<vmem>>, vector<1x8x64xf32>
    %6 = vector.shape_cast %5 : vector<1x8x64xf32> to vector<8x64xf32>
    %c0_8 = arith.constant 0 : index
    %c0_9 = arith.constant 0 : index
    %7 = vector.load %arg5[%c0_8, %c0_9] : memref<64x256xf32, #tpu.memory_space<vmem>>, vector<64x256xf32>
    %cst = arith.constant dense<0.000000e+00> : vector<8x256xf32>
    %8 = tpu.matmul %6, %7, %cst {dimension_numbers = #tpu.dot_dimension_numbers<[1], [0], [0], [1], [0, 0, 1, 1], [], []>} : vector<8x64xf32>, vector<64x256xf32>, vector<8x256xf32> -> vector<8x256xf32>
    %c0_10 = arith.constant 0 : index
    %c4 = arith.constant 4 : index
    %c0_11 = arith.constant 0 : index
    %9 = vector.load %arg7[%c0_10, %c4, %c0_11] : memref<1x28x256xf32, #tpu.memory_space<vmem>>, vector<1x8x256xf32>
    %10 = vector.shape_cast %9 : vector<1x8x256xf32> to vector<8x256xf32>
    %11 = vector.shape_cast %8 : vector<8x256xf32> to vector<1x8x256xf32>
    tpu.vector_store %arg7[%c0_10, %c4, %c0_11], %11 {strides = array<i32>} : memref<1x28x256xf32, #tpu.memory_space<vmem>>, vector<1x8x256xf32>,
    %c0_12 = arith.constant 0 : index
    %c0_13 = arith.constant 0 : index
    %c0_14 = arith.constant 0 : index
    %12 = vector.load %arg4[%c0_12, %c0_13, %c0_14] : memref<1x16x16xf32, #tpu.memory_space<vmem>>, vector<1x16x16xf32>
    %13 = vector.shape_cast %12 : vector<1x16x16xf32> to vector<16x16xf32>
    %c0_15 = arith.constant 0 : index
    %c0_16 = arith.constant 0 : index
    %14 = vector.load %arg6[%c0_15, %c0_16] : memref<16x256xf32, #tpu.memory_space<vmem>>, vector<16x256xf32>
    %cst_17 = arith.constant dense<0.000000e+00> : vector<16x256xf32>
    %15 = tpu.matmul %13, %14, %cst_17 {dimension_numbers = #tpu.dot_dimension_numbers<[1], [0], [0], [1], [0, 0, 1, 1], [], []>} : vector<16x16xf32>, vector<16x256xf32>, vector<16x256xf32> -> vector<16x256xf32>
    %c0_18 = arith.constant 0 : index
    %c12 = arith.constant 12 : index
    %c0_19 = arith.constant 0 : index
    %16 = vector.load %arg7[%c0_18, %c12, %c0_19] : memref<1x28x256xf32, #tpu.memory_space<vmem>>, vector<1x16x256xf32>
    %17 = vector.shape_cast %16 : vector<1x16x256xf32> to vector<16x256xf32>
    %18 = vector.shape_cast %15 : vector<16x256xf32> to vector<1x16x256xf32>
    tpu.vector_store %arg7[%c0_18, %c12, %c0_19], %18 {strides = array<i32>} : memref<1x28x256xf32, #tpu.memory_space<vmem>>, vector<1x16x256xf32>,
    return
  }
  func.func @transform_0(%arg0: i32, %arg1: i32) -> (i32, i32, i32) {
    %c0_i32 = arith.constant 0 : i32
    %c0_i32_0 = arith.constant 0 : i32
    return %arg0, %c0_i32, %arg1 : i32, i32, i32
  }
  func.func @transform_1(%arg0: i32, %arg1: i32) -> (i32, i32, i32) {
    %c0_i32 = arith.constant 0 : i32
    %c0_i32_0 = arith.constant 0 : i32
    %c0_i32_1 = arith.constant 0 : i32
    return %arg0, %c0_i32, %c0_i32_0 : i32, i32, i32
  }
  func.func @transform_2(%arg0: i32, %arg1: i32) -> (i32, i32, i32) {
    %c0_i32 = arith.constant 0 : i32
    %c0_i32_0 = arith.constant 0 : i32
    %c0_i32_1 = arith.constant 0 : i32
    return %arg0, %c0_i32, %c0_i32_0 : i32, i32, i32
  }
  func.func @transform_3(%arg0: i32, %arg1: i32) -> (i32, i32) {
    %c0_i32 = arith.constant 0 : i32
    %c0_i32_0 = arith.constant 0 : i32
    return %c0_i32, %arg1 : i32, i32
  }
  func.func @transform_4(%arg0: i32, %arg1: i32) -> (i32, i32) {
    %c0_i32 = arith.constant 0 : i32
    %c0_i32_0 = arith.constant 0 : i32
    return %c0_i32, %arg1 : i32, i32
  }
  func.func @transform_5(%arg0: i32, %arg1: i32) -> (i32, i32, i32) {
    %c0_i32 = arith.constant 0 : i32
    %c0_i32_0 = arith.constant 0 : i32
    return %arg0, %c0_i32, %arg1 : i32, i32, i32
  }
}

</mosaic_0001>

<llo_original>
// kernel: tpu_custom_call.1
$region0: #{tpu_custom_call.1}
  #allocation0 [shape = 'u32[]', space=smem, size = 0x4, offset = 0x4, fixed_abs, tag = 'smem constant byte address 0x4 - core index']
  #allocation1 [shape = 'u32[144,128]{1,0:T(1,128)}', space=vmem, size = 0x12000, scoped, tag = 'internal scratch']
  %s0 = inlined_call_operand.hbm [shape: f32[2,4,256], index: 0, kind: input, shape index: {}]
  %s1 = inlined_call_operand.hbm [shape: f32[2,8,64], index: 1, kind: input, shape index: {}]
  %s2 = inlined_call_operand.hbm [shape: f32[2,16,16], index: 2, kind: input, shape index: {}]
  %s3 = inlined_call_operand.hbm [shape: f32[64,256], index: 3, kind: input, shape index: {}]
  %s4 = inlined_call_operand.hbm [shape: f32[16,256], index: 4, kind: input, shape index: {}]
  %s5 = inlined_call_operand.vmem [shape: f32[2,28,256], index: 5, kind: output, shape index: {}]
  %s6 = sld [smem:[#allocation0]]
  $region73: #{tpu_custom_call.1} parent=0
    _
  %s8 = ssub.s32 1, %s6
  %s9 = scalar_select 0, %s8, %s6
  $region1: #{tpu_custom_call.1} parent=0
    #allocation2 [shape = 'u8[8192]{0}', space=vmem, size = 0x2000, scoped, tag = 'input window, operand 0']
    #allocation3 [shape = 's32[2]{0}', space=sflag, size = 0x8, scoped, tag = 'scoped memory for tpu_custom_call.1']
    #allocation4 [shape = 'u8[8192]{0}', space=vmem, size = 0x2000, scoped, tag = 'input window, operand 1']
    #allocation5 [shape = 's32[2]{0}', space=sflag, size = 0x8, scoped, tag = 'scoped memory for tpu_custom_call.1']
    #allocation6 [shape = 'u8[16384]{0}', space=vmem, size = 0x4000, scoped, tag = 'input window, operand 2']
    #allocation7 [shape = 'u8[65536]{0}', space=vmem, size = 0x10000, scoped, tag = 'input window, operand 3, single buffered']
    #allocation8 [shape = 's32[1]{0}', space=sflag, size = 0x4, scoped, tag = 'scoped memory for tpu_custom_call.1']
    #allocation9 [shape = 'u8[16384]{0}', space=vmem, size = 0x4000, scoped, tag = 'input window, operand 4, single buffered']
    %10 = vsyncpa [#allocation3], 0
    %s11 = scalar_lea.sflag [#allocation3], 1
    %12 = vsyncpa %s11, 0
    %13 = vsyncpa [#allocation5], 0
    %s14 = scalar_lea.sflag [#allocation5], 1
    %15 = vsyncpa %s14, 0
    %16 = vsyncpa [#allocation8], 0
    loop: start=0, step=1, limit=4
    $region2: #{tpu_custom_call.1} parent=1 // loop_pre_header
      _
    $region3: #{tpu_custom_call.1} parent=1 // loop_header
      %s18 = sphi 0, %s22
      %p19 = scmp.ge.s32.totalorder %s18, 4
      %s25 = sphi 0, %s37
      %s26 = sphi 0, %s33
      %s27 = sphi 0, %s25
      %s28 = sphi 0, %s26
      %s29 = sphi 0, %s27
      %s30 = sphi 0, %s28
      %s42 = sphi 0, %s44
      %s45 = sphi 0, %s42
      %s46 = sphi 0, %s45
      %s62 = sphi 0, %s46
      %s68 = sphi 0, %s70
      %s71 = sphi 0, %s68
      %s72 = sphi 0, %s71
      %s88 = sphi 0, %s72
      %s94 = sphi 0, %s96
      %s97 = sphi 0, %s94
      %s98 = sphi 0, %s97
      %s114 = sphi 0, %s98
      %s120 = sphi 0, %s122
      %s123 = sphi 0, %s120
      %s124 = sphi 0, %s123
      %s140 = sphi 0, %s124
      %s146 = sphi 0, %s148
      %s149 = sphi 0, %s146
      %s150 = sphi 0, %s149
      %s166 = sphi 0, %s150
      %s174 = sphi 0, %s176
      %s177 = sphi 0, %s174
      %s178 = sphi 0, %s177
      %s194 = sphi 0, %s178
    $region4: #{tpu_custom_call.1} parent=1 // loop_header_branch
      %21 = sbr.rel (%p19) target = $region8
    $region5: #{tpu_custom_call.1} parent=1 // loop_body
      %s23 = ssub.s32 %s18, 1
      %s24 = ssub.s32 %s18, 2
      %s31 = sadd.s32 1, %s26
      %p32 = scmp.ge.s32.totalorder %s31, 1
      %s33 = scalar_select %p32, 0, %s31
      %s34 = sadd.s32 1, %s25
      %s35 = scalar_select %p32, %s34, %s25
      %p36 = scmp.ge.s32.totalorder %s35, 2
      %s37 = scalar_select %p36, 0, %s35
      %s38 = ssub.s32 %s25, %s37
      %s39 = ssub.s32 %s26, %s33
      %s40 = sor.u32 %s38, %s39
      %p41 = scmp.eq.s32.totalorder %s40, 0
      %s43 = sadd.s32 %s42, 1
      %s44 = scalar_select %p41, %s42, %s43
      %p47 = pneg %p41
      %p48 = scmp.eq.s32.totalorder %s18, 1
      %p49 = por %p47, %p48
      %p50 = scmp.ne.s32.totalorder %s42, %s45
      %p51 = scmp.eq.s32.totalorder %s18, 0
      %p52 = por %p50, %p51
      %p53 = scmp.ne.s32.totalorder %s42, %s45
      %p54 = scmp.eq.s32.totalorder %s23, 1
      %p55 = por %p53, %p54
      %p56 = scmp.ne.s32.totalorder %s45, %s46
      %p57 = scmp.eq.s32.totalorder %s23, 0
      %p58 = por %p56, %p57
      %p59 = scmp.ne.s32.totalorder %s45, %s46
      %p60 = scmp.eq.s32.totalorder %s24, 1
      %p61 = por %p59, %p60
      %p63 = scmp.ne.s32.totalorder %s46, %s62
      %p64 = scmp.eq.s32.totalorder %s24, 0
      %p65 = por %p63, %p64
      %s66 = ssub.s32 %s25, %s37
      %p67 = scmp.eq.s32.totalorder %s66, 0
      %s69 = sadd.s32 %s68, 1
      %s70 = scalar_select %p67, %s68, %s69
      %p73 = pneg %p67
      %p74 = scmp.eq.s32.totalorder %s18, 1
      %p75 = por %p73, %p74
      %p76 = scmp.ne.s32.totalorder %s68, %s71
      %p77 = scmp.eq.s32.totalorder %s18, 0
      %p78 = por %p76, %p77
      %p79 = scmp.ne.s32.totalorder %s68, %s71
      %p80 = scmp.eq.s32.totalorder %s23, 1
      %p81 = por %p79, %p80
      %p82 = scmp.ne.s32.totalorder %s71, %s72
      %p83 = scmp.eq.s32.totalorder %s23, 0
      %p84 = por %p82, %p83
      %p85 = scmp.ne.s32.totalorder %s71, %s72
      %p86 = scmp.eq.s32.totalorder %s24, 1
      %p87 = por %p85, %p86
      %p89 = scmp.ne.s32.totalorder %s72, %s88
      %p90 = scmp.eq.s32.totalorder %s24, 0
      %p91 = por %p89, %p90
      %s92 = ssub.s32 %s25, %s37
      %p93 = scmp.eq.s32.totalorder %s92, 0
      %s95 = sadd.s32 %s94, 1
      %s96 = scalar_select %p93, %s94, %s95
      %p99 = pneg %p93
      %p100 = scmp.eq.s32.totalorder %s18, 1
      %p101 = por %p99, %p100
      %p102 = scmp.ne.s32.totalorder %s94, %s97
      %p103 = scmp.eq.s32.totalorder %s18, 0
      %p104 = por %p102, %p103
      %p105 = scmp.ne.s32.totalorder %s94, %s97
      %p106 = scmp.eq.s32.totalorder %s23, 1
      %p107 = por %p105, %p106
      %p108 = scmp.ne.s32.totalorder %s97, %s98
      %p109 = scmp.eq.s32.totalorder %s23, 0
      %p110 = por %p108, %p109
      %p111 = scmp.ne.s32.totalorder %s97, %s98
      %p112 = scmp.eq.s32.totalorder %s24, 1
      %p113 = por %p111, %p112
      %p115 = scmp.ne.s32.totalorder %s98, %s114
      %p116 = scmp.eq.s32.totalorder %s24, 0
      %p117 = por %p115, %p116
      %s118 = ssub.s32 %s26, %s33
      %p119 = scmp.eq.s32.totalorder %s118, 0
      %s121 = sadd.s32 %s120, 1
      %s122 = scalar_select %p119, %s120, %s121
      %p125 = pneg %p119
      %p126 = scmp.eq.s32.totalorder %s18, 1
      %p127 = por %p125, %p126
      %p128 = scmp.ne.s32.totalorder %s120, %s123
      %p129 = scmp.eq.s32.totalorder %s18, 0
      %p130 = por %p128, %p129
      %p131 = scmp.ne.s32.totalorder %s120, %s123
      %p132 = scmp.eq.s32.totalorder %s23, 1
      %p133 = por %p131, %p132
      %p134 = scmp.ne.s32.totalorder %s123, %s124
      %p135 = scmp.eq.s32.totalorder %s23, 0
      %p136 = por %p134, %p135
      %p137 = scmp.ne.s32.totalorder %s123, %s124
      %p138 = scmp.eq.s32.totalorder %s24, 1
      %p139 = por %p137, %p138
      %p141 = scmp.ne.s32.totalorder %s124, %s140
      %p142 = scmp.eq.s32.totalorder %s24, 0
      %p143 = por %p141, %p142
      %s144 = ssub.s32 %s26, %s33
      %p145 = scmp.eq.s32.totalorder %s144, 0
      %s147 = sadd.s32 %s146, 1
      %s148 = scalar_select %p145, %s146, %s147
      %p151 = pneg %p145
      %p152 = scmp.eq.s32.totalorder %s18, 1
      %p153 = por %p151, %p152
      %p154 = scmp.ne.s32.totalorder %s146, %s149
      %p155 = scmp.eq.s32.totalorder %s18, 0
      %p156 = por %p154, %p155
      %p157 = scmp.ne.s32.totalorder %s146, %s149
      %p158 = scmp.eq.s32.totalorder %s23, 1
      %p159 = por %p157, %p158
      %p160 = scmp.ne.s32.totalorder %s149, %s150
      %p161 = scmp.eq.s32.totalorder %s23, 0
      %p162 = por %p160, %p161
      %p163 = scmp.ne.s32.totalorder %s149, %s150
      %p164 = scmp.eq.s32.totalorder %s24, 1
      %p165 = por %p163, %p164
      %p167 = scmp.ne.s32.totalorder %s150, %s166
      %p168 = scmp.eq.s32.totalorder %s24, 0
      %p169 = por %p167, %p168
      %s170 = ssub.s32 %s25, %s37
      %s171 = ssub.s32 %s26, %s33
      %s172 = sor.u32 %s170, %s171
      %p173 = scmp.eq.s32.totalorder %s172, 0
      %s175 = sadd.s32 %s174, 1
      %s176 = scalar_select %p173, %s174, %s175
      %p179 = pneg %p173
      %p180 = scmp.eq.s32.totalorder %s18, 1
      %p181 = por %p179, %p180
      %p182 = scmp.ne.s32.totalorder %s174, %s177
      %p183 = scmp.eq.s32.totalorder %s18, 0
      %p184 = por %p182, %p183
      %p185 = scmp.ne.s32.totalorder %s174, %s177
      %p186 = scmp.eq.s32.totalorder %s23, 1
      %p187 = por %p185, %p186
      %p188 = scmp.ne.s32.totalorder %s177, %s178
      %p189 = scmp.eq.s32.totalorder %s23, 0
      %p190 = por %p188, %p189
      %p191 = scmp.ne.s32.totalorder %s177, %s178
      %p192 = scmp.eq.s32.totalorder %s24, 1
      %p193 = por %p191, %p192
      %p195 = scmp.ne.s32.totalorder %s178, %s194
      %p196 = scmp.eq.s32.totalorder %s24, 0
      %p197 = por %p195, %p196
      %p198 = scmp.le.s32.totalorder 1, %s18
      %p199 = scmp.lt.s32.totalorder %s18, 3
      %p200 = pnand %p198, %p199
      %p201 = pneg %p200
      // Predicated region
      $region9: #{tpu_custom_call.1} parent=5 // pred_check
        _
      $region10: #{tpu_custom_call.1} parent=5 // pred_check_branch
        %203 = sbr.rel (%p200) target = $region12
      $region11: #{tpu_custom_call.1} parent=5 // pred_region
        %s204 = ssub.s32 %s18, 1
        // Predicated region
        $region13: #{tpu_custom_call.1} parent=11 // pred_check
          %p205 = pneg %p136
        $region14: #{tpu_custom_call.1} parent=11 // pred_check_branch
          %207 = sbr.rel (%p205) target = $region16
        $region15: #{tpu_custom_call.1} parent=11 // pred_region
          %s208 = smul.u32 2, %s28
          %s210 = ssub.s32 2048, 2048
          %211 = vsyncadd [#allocation8], %s210
          %s212 = smul.addr %s208, 128
          %s213 = scalar_lea.hbm %s3, %s212
          %s214 = sshll.u32 [#allocation7], 4
          %s215 = int_to_ptr.vmem [resolvable:$true] %s214
          %220 = dma.hbm_to_vmem [thread:$0]  %s213, 2048, %s215, [#allocation8], 256, 256, 16
        $region16: #{tpu_custom_call.1} parent=11 // pred_fallthru
          _
        // Predicated region
        $region17: #{tpu_custom_call.1} parent=11 // pred_check
          %p221 = pneg %p162
        $region18: #{tpu_custom_call.1} parent=11 // pred_check_branch
          %223 = sbr.rel (%p221) target = $region20
        $region19: #{tpu_custom_call.1} parent=11 // pred_region
          %s224 = smul.u32 2, %s28
          %s226 = ssub.s32 512, 512
          %227 = vsyncadd [#allocation8], %s226
          %s228 = smul.addr %s224, 128
          %s229 = scalar_lea.hbm %s4, %s228
          %s230 = sshll.u32 [#allocation9], 4
          %s231 = int_to_ptr.vmem [resolvable:$true] %s230
          %236 = dma.hbm_to_vmem [thread:$0]  %s229, 512, %s231, [#allocation8], 256, 256, 16
        $region20: #{tpu_custom_call.1} parent=11 // pred_fallthru
          _
      $region12: #{tpu_custom_call.1} parent=5 // pred_fallthru
        _
      %p237 = scmp.lt.s32.totalorder %s18, 2
      // Predicated region
      $region21: #{tpu_custom_call.1} parent=5 // pred_check
        %p238 = pneg %p237
      $region22: #{tpu_custom_call.1} parent=5 // pred_check_branch
        %240 = sbr.rel (%p238) target = $region24
      $region23: #{tpu_custom_call.1} parent=5 // pred_region
        // Predicated region
        $region25: #{tpu_custom_call.1} parent=23 // pred_check
          %p241 = pneg %p52
        $region26: #{tpu_custom_call.1} parent=23 // pred_check_branch
          %243 = sbr.rel (%p241) target = $region28
        $region27: #{tpu_custom_call.1} parent=23 // pred_region
          %s244 = sand.u32 %s42, 1
          %s245 = scalar_lea.sflag [#allocation3], %s244
          %s246 = sand.u32 %s42, 1
          %s247 = smul.addr %s246, 8
          %s248 = scalar_lea.vmem [#allocation2], %s247
          %s249 = smul.u32 2, %s26
          %s251 = ssub.s32 128, 128
          %252 = vsyncadd %s245, %s251
          %s253 = smul.addr %s25, 2
          %s254 = sadd.s32 %s249, %s253
          %s255 = smul.addr %s254, 64
          %s256 = scalar_lea.hbm %s0, %s255
          %s258 = sshll.u32 %s248, 4
          %s259 = int_to_ptr.vmem [resolvable:$true] %s258
          %261 = dma.hbm_to_vmem [thread:$0]  %s256, 128, %s259, %s245
        $region28: #{tpu_custom_call.1} parent=23 // pred_fallthru
          _
        // Predicated region
        $region29: #{tpu_custom_call.1} parent=23 // pred_check
          %p262 = pneg %p78
        $region30: #{tpu_custom_call.1} parent=23 // pred_check_branch
          %264 = sbr.rel (%p262) target = $region32
        $region31: #{tpu_custom_call.1} parent=23 // pred_region
          %s265 = sand.u32 %s18, 1
          %s266 = scalar_lea.sflag [#allocation5], %s265
          %s267 = sand.u32 %s68, 1
          %s268 = smul.addr %s267, 8
          %s269 = scalar_lea.vmem [#allocation4], %s268
          %s271 = ssub.s32 128, 128
          %272 = vsyncadd %s266, %s271
          %s273 = smul.addr %s25, 128
          %s274 = scalar_lea.hbm %s1, %s273
          %s276 = sshll.u32 %s269, 4
          %s277 = int_to_ptr.vmem [resolvable:$true] %s276
          %279 = dma.hbm_to_vmem [thread:$0]  %s274, 128, %s277, %s266
        $region32: #{tpu_custom_call.1} parent=23 // pred_fallthru
          _
        // Predicated region
        $region33: #{tpu_custom_call.1} parent=23 // pred_check
          %p280 = pneg %p104
        $region34: #{tpu_custom_call.1} parent=23 // pred_check_branch
          %282 = sbr.rel (%p280) target = $region36
        $region35: #{tpu_custom_call.1} parent=23 // pred_region
          %s283 = sand.u32 %s18, 1
          %s284 = scalar_lea.sflag [#allocation5], %s283
          %s285 = sand.u32 %s94, 1
          %s286 = smul.addr %s285, 16
          %s287 = scalar_lea.vmem [#allocation6], %s286
          %s289 = ssub.s32 256, 256
          %290 = vsyncadd %s284, %s289
          %s291 = smul.addr %s25, 2
          %s292 = smul.addr %s291, 128
          %s293 = scalar_lea.hbm %s2, %s292
          %s294 = sshll.u32 %s287, 4
          %s295 = int_to_ptr.vmem [resolvable:$true] %s294
          %300 = dma.hbm_to_vmem [thread:$0]  %s293, 256, %s295, %s284, 128, 128, 8
        $region36: #{tpu_custom_call.1} parent=23 // pred_fallthru
          _
      $region24: #{tpu_custom_call.1} parent=5 // pred_fallthru
        _
      %p301 = scmp.le.s32.totalorder 1, %s18
      %p302 = scmp.lt.s32.totalorder %s18, 3
      %p303 = pnand %p301, %p302
      %p304 = pneg %p303
      // Predicated region
      $region37: #{tpu_custom_call.1} parent=5 // pred_check
        _
      $region38: #{tpu_custom_call.1} parent=5 // pred_check_branch
        %306 = sbr.rel (%p303) target = $region40
      $region39: #{tpu_custom_call.1} parent=5 // pred_region
        %s307 = ssub.s32 %s18, 1
        %s308 = sand.u32 %s45, 1
        %s309 = scalar_lea.sflag [#allocation3], %s308
        %s310 = sand.u32 %s45, 1
        %s311 = smul.addr %s310, 8
        %s312 = scalar_lea.vmem [#allocation2], %s311
        // Predicated region
        $region41: #{tpu_custom_call.1} parent=39 // pred_check
          %p313 = pneg %p58
        $region42: #{tpu_custom_call.1} parent=39 // pred_check_branch
          %315 = sbr.rel (%p313) target = $region44
        $region43: #{tpu_custom_call.1} parent=39 // pred_region
          %316 = dma.done %s309, 128
        $region44: #{tpu_custom_call.1} parent=39 // pred_fallthru
          _
        %s317 = sand.u32 %s23, 1
        %s318 = scalar_lea.sflag [#allocation5], %s317
        %s319 = sand.u32 %s71, 1
        %s320 = smul.addr %s319, 8
        %s321 = scalar_lea.vmem [#allocation4], %s320
        // Predicated region
        $region45: #{tpu_custom_call.1} parent=39 // pred_check
          %p322 = pneg %p84
        $region46: #{tpu_custom_call.1} parent=39 // pred_check_branch
          %324 = sbr.rel (%p322) target = $region48
        $region47: #{tpu_custom_call.1} parent=39 // pred_region
          %325 = dma.done %s318, 128
        $region48: #{tpu_custom_call.1} parent=39 // pred_fallthru
          _
        %s326 = sand.u32 %s23, 1
        %s327 = scalar_lea.sflag [#allocation5], %s326
        %s328 = sand.u32 %s97, 1
        %s329 = smul.addr %s328, 16
        %s330 = scalar_lea.vmem [#allocation6], %s329
        // Predicated region
        $region49: #{tpu_custom_call.1} parent=39 // pred_check
          %p331 = pneg %p110
        $region50: #{tpu_custom_call.1} parent=39 // pred_check_branch
          %333 = sbr.rel (%p331) target = $region52
        $region51: #{tpu_custom_call.1} parent=39 // pred_region
          %334 = dma.done %s327, 256
        $region52: #{tpu_custom_call.1} parent=39 // pred_fallthru
          _
        // Predicated region
        $region53: #{tpu_custom_call.1} parent=39 // pred_check
          %p335 = pneg %p136
        $region54: #{tpu_custom_call.1} parent=39 // pred_check_branch
          %337 = sbr.rel (%p335) target = $region56
        $region55: #{tpu_custom_call.1} parent=39 // pred_region
          %338 = dma.done [#allocation8], 2048
        $region56: #{tpu_custom_call.1} parent=39 // pred_fallthru
          _
        // Predicated region
        $region57: #{tpu_custom_call.1} parent=39 // pred_check
          %p339 = pneg %p162
        $region58: #{tpu_custom_call.1} parent=39 // pred_check_branch
          %341 = sbr.rel (%p339) target = $region60
        $region59: #{tpu_custom_call.1} parent=39 // pred_region
          %342 = dma.done [#allocation8], 512
        $region60: #{tpu_custom_call.1} parent=39 // pred_fallthru
          _
        %s343 = sand.u32 %s45, 1
        %s344 = scalar_lea.sflag [#allocation3], %s343
        %s345 = sand.u32 %s45, 1
        %s346 = smul.addr %s345, 8
        %s347 = scalar_lea.vmem [#allocation2], %s346
        %p348 = pneg %p58
        %p349 = pneg %p55
        %s350 = sand.u32 %s23, 1
        %s351 = scalar_lea.sflag [#allocation5], %s350
        %s352 = sand.u32 %s71, 1
        %s353 = smul.addr %s352, 8
        %s354 = scalar_lea.vmem [#allocation4], %s353
        %p355 = pneg %p84
        %p356 = pneg %p81
        %s357 = sand.u32 %s23, 1
        %s358 = scalar_lea.sflag [#allocation5], %s357
        %s359 = sand.u32 %s97, 1
        %s360 = smul.addr %s359, 16
        %s361 = scalar_lea.vmem [#allocation6], %s360
        %p362 = pneg %p110
        %p363 = pneg %p107
        %p364 = pneg %p136
        %p365 = pneg %p133
        %p366 = pneg %p162
        %p367 = pneg %p159
        %p368 = pneg %p190
        %p369 = pneg %p187
        %s370 = smul.u32 2, %s28
        %p371 = scmp.lt.s32.totalorder %s27, 1
        %s372 = scalar_select %p371, %s27, 1
        %p373 = scmp.lt.s32.totalorder %s370, 1
        %s374 = scalar_select %p373, %s370, 1
        %s375 = smul.addr %s372, 8
        %s376 = sadd.s32 %s374, %s375
        %s377 = smul.addr %s376, 8
        %s378 = scalar_lea.vmem %s5, %s377
        %s379 = smul.u32 2, %s28
        %s380 = smul.u32 2, %s28
        %s381 = smul.u32 2, %s28
        %s382 = smul.u32 2, %s28
        %p383 = scmp.lt.s32.totalorder %s27, 1
        %s384 = scalar_select %p383, %s27, 1
        %p385 = scmp.lt.s32.totalorder %s382, 1
        %s386 = scalar_select %p385, %s382, 1
        %s387 = smul.addr %s384, 8
        %s388 = sadd.s32 %s386, %s387
        %s389 = smul.addr %s388, 8
        %s390 = scalar_lea.vmem %s5, %s389
        %s391 = smul.u32 2, %s28
        %v392 = vld [vmem:[%s312] sm:$0xff]
        %v394 = vcombine.high %v392, %v392
        %396 = vst [vmem:[%s390] sm:$0xf] %v392
        %397 = vst [vmem:[%s390 + $0x8] sm:$0xf] %v394
        %v398 = vld [vmem:[%s321] sm:$0xff]
        %v399 = vld [vmem:[#allocation7] sm:$0xff]
        %v400 = vld [vmem:[#allocation7 + $0x8] sm:$0xff]
        %v401 = vld [vmem:[#allocation7 + $0x10] sm:$0xff]
        %v402 = vld [vmem:[#allocation7 + $0x18] sm:$0xff]
        %v403 = vld [vmem:[#allocation7 + $0x20] sm:$0xff]
        %v404 = vld [vmem:[#allocation7 + $0x28] sm:$0xff]
        %v405 = vld [vmem:[#allocation7 + $0x30] sm:$0xff]
        %v406 = vld [vmem:[#allocation7 + $0x38] sm:$0xff]
        %v407 = vld [vmem:[#allocation7 + $0x40] sm:$0xff]
        %v408 = vld [vmem:[#allocation7 + $0x48] sm:$0xff]
        %v409 = vld [vmem:[#allocation7 + $0x50] sm:$0xff]
        %v410 = vld [vmem:[#allocation7 + $0x58] sm:$0xff]
        %v411 = vld [vmem:[#allocation7 + $0x60] sm:$0xff]
        %v412 = vld [vmem:[#allocation7 + $0x68] sm:$0xff]
        %v413 = vld [vmem:[#allocation7 + $0x70] sm:$0xff]
        %v414 = vld [vmem:[#allocation7 + $0x78] sm:$0xff]
        %vm415 = vcmask 523264
        %v417 = vsel %vm415, %v398, 0
        %419 = vmatprep.subr.mxu0 %v400
        %420 = vmatpush1.msra.mxu0 %v399
        %421 = vmatprep.subr.mxu0 %v402
        %422 = vmatpush1.msra.mxu0 %v401
        %423 = vmatprep.subr.mxu0 %v404
        %424 = vmatpush1.msra.mxu0 %v403
        %425 = vmatprep.subr.mxu0 %v406
        %426 = vmatpush1.msra.mxu0 %v405
        %427 = vmatprep.subr.mxu0 %v408
        %428 = vmatpush1.msra.mxu0 %v407
        %429 = vmatprep.subr.mxu0 %v410
        %430 = vmatpush1.msra.mxu0 %v409
        %431 = vmatprep.subr.mxu0 %v412
        %432 = vmatpush1.msra.mxu0 %v411
        %433 = vmatprep.subr.mxu0 %v414
        %434 = vmatpush1.msra.mxu0 %v413
        %435 = vmatprep.subr.mxu0 0.0
        %436 = vmatpush1.msra.mxu0 0.0
        %437 = vmatprep.subr.mxu0 0.0
        %438 = vmatpush1.msra.mxu0 0.0
        %439 = vmatprep.subr.mxu0 0.0
        %440 = vmatpush1.msra.mxu0 0.0
        %441 = vmatprep.subr.mxu0 0.0
        %442 = vmatpush1.msra.mxu0 0.0
        %443 = vmatprep.subr.mxu0 0.0
        %444 = vmatpush1.msra.mxu0 0.0
        %445 = vmatprep.subr.mxu0 0.0
        %446 = vmatpush1.msra.mxu0 0.0
        %447 = vmatprep.subr.mxu0 0.0
        %448 = vmatpush1.msra.mxu0 0.0
        %449 = vmatprep.subr.mxu0 0.0
        %450 = vmatpush1.msra.mxu0 0.0
        %451 = vmatprep.subr.mxu0 0.0
        %452 = vmatpush1.msra.mxu0 0.0
        %453 = vmatprep.subr.mxu0 0.0
        %454 = vmatpush1.msra.mxu0 0.0
        %455 = vmatprep.subr.mxu0 0.0
        %456 = vmatpush1.msra.mxu0 0.0
        %457 = vmatprep.subr.mxu0 0.0
        %458 = vmatpush1.msra.mxu0 0.0
        %459 = vmatprep.subr.mxu0 0.0
        %460 = vmatpush1.msra.mxu0 0.0
        %461 = vmatprep.subr.mxu0 0.0
        %462 = vmatpush1.msra.mxu0 0.0
        %463 = vmatprep.subr.mxu0 0.0
        %464 = vmatpush1.msra.mxu0 0.0
        %465 = vmatprep.subr.mxu0 0.0
        %466 = vmatpush1.msra.mxu0 0.0
        %467 = vmatprep.subr.mxu0 0.0
        %468 = vmatpush1.msra.mxu0 0.0
        %469 = vmatprep.subr.mxu0 0.0
        %470 = vmatpush1.msra.mxu0 0.0
        %471 = vmatprep.subr.mxu0 0.0
        %472 = vmatpush1.msra.mxu0 0.0
        %473 = vmatprep.subr.mxu0 0.0
        %474 = vmatpush1.msra.mxu0 0.0
        %475 = vmatprep.subr.mxu0 0.0
        %476 = vmatpush1.msra.mxu0 0.0
        %477 = vmatprep.subr.mxu0 0.0
        %478 = vmatpush1.msra.mxu0 0.0
        %479 = vmatprep.subr.mxu0 0.0
        %480 = vmatpush1.msra.mxu0 0.0
        %481 = vmatprep.subr.mxu0 0.0
        %482 = vmatpush1.msra.mxu0 0.0
        %483 = vmatprep.mubr.f32.mxu0 0.0
        %484 = vmatmul.mubr.f32.gmra.mrb[0].mxu0 %v417
        %v485 = vpop.f32.mrb[0].mxu0
        %v486 = vadd.f32 0.0, %v485
        %v487 = vpop.f32.mrb[0].mxu0
        %v488 = vadd.f32 0.0, %v487
        %489 = vdwg.mxu0
        %v492 = vrot.slane %v486, 4
        %v493 = vrot.slane %v488, 4
        %496 = vst [vmem:[%s390] sm:$0xf0] %v492
        %497 = vst [vmem:[%s390 + $0x8] sm:$0xf0] %v493
        %498 = vst [vmem:[%s390 + $0x10] sm:$0xf] %v492
        %499 = vst [vmem:[%s390 + $0x18] sm:$0xf] %v493
        %v500 = vld [vmem:[%s330] sm:$0xff]
        %v501 = vld [vmem:[%s330 + $0x8] sm:$0xff]
        %v502 = vld [vmem:[#allocation9] sm:$0xff]
        %v503 = vld [vmem:[#allocation9 + $0x8] sm:$0xff]
        %v504 = vld [vmem:[#allocation9 + $0x10] sm:$0xff]
        %v505 = vld [vmem:[#allocation9 + $0x18] sm:$0xff]
        %vm506 = vcmask 130048
        %v508 = vsel %vm506, %v500, 0
        %v511 = vsel %vm506, %v501, 0
        %513 = vmatprep.subr.mxu0 %v503
        %514 = vmatpush1.msra.mxu0 %v502
        %515 = vmatprep.subr.mxu0 %v505
        %516 = vmatpush1.msra.mxu0 %v504
        %517 = vmatprep.subr.mxu0 0.0
        %518 = vmatpush1.msra.mxu0 0.0
        %519 = vmatprep.subr.mxu0 0.0
        %520 = vmatpush1.msra.mxu0 0.0
        %521 = vmatprep.subr.mxu0 0.0
        %522 = vmatpush1.msra.mxu0 0.0
        %523 = vmatprep.subr.mxu0 0.0
        %524 = vmatpush1.msra.mxu0 0.0
        %525 = vmatprep.subr.mxu0 0.0
        %526 = vmatpush1.msra.mxu0 0.0
        %527 = vmatprep.subr.mxu0 0.0
        %528 = vmatpush1.msra.mxu0 0.0
        %529 = vmatprep.subr.mxu0 0.0
        %530 = vmatpush1.msra.mxu0 0.0
        %531 = vmatprep.subr.mxu0 0.0
        %532 = vmatpush1.msra.mxu0 0.0
        %533 = vmatprep.subr.mxu0 0.0
        %534 = vmatpush1.msra.mxu0 0.0
        %535 = vmatprep.subr.mxu0 0.0
        %536 = vmatpush1.msra.mxu0 0.0
        %537 = vmatprep.subr.mxu0 0.0
        %538 = vmatpush1.msra.mxu0 0.0
        %539 = vmatprep.subr.mxu0 0.0
        %540 = vmatpush1.msra.mxu0 0.0
        %541 = vmatprep.subr.mxu0 0.0
        %542 = vmatpush1.msra.mxu0 0.0
        %543 = vmatprep.subr.mxu0 0.0
        %544 = vmatpush1.msra.mxu0 0.0
        %545 = vmatprep.subr.mxu0 0.0
        %546 = vmatpush1.msra.mxu0 0.0
        %547 = vmatprep.subr.mxu0 0.0
        %548 = vmatpush1.msra.mxu0 0.0
        %549 = vmatprep.subr.mxu0 0.0
        %550 = vmatpush1.msra.mxu0 0.0
        %551 = vmatprep.subr.mxu0 0.0
        %552 = vmatpush1.msra.mxu0 0.0
        %553 = vmatprep.subr.mxu0 0.0
        %554 = vmatpush1.msra.mxu0 0.0
        %555 = vmatprep.subr.mxu0 0.0
        %556 = vmatpush1.msra.mxu0 0.0
        %557 = vmatprep.subr.mxu0 0.0
        %558 = vmatpush1.msra.mxu0 0.0
        %559 = vmatprep.subr.mxu0 0.0
        %560 = vmatpush1.msra.mxu0 0.0
        %561 = vmatprep.subr.mxu0 0.0
        %562 = vmatpush1.msra.mxu0 0.0
        %563 = vmatprep.subr.mxu0 0.0
        %564 = vmatpush1.msra.mxu0 0.0
        %565 = vmatprep.subr.mxu0 0.0
        %566 = vmatpush1.msra.mxu0 0.0
        %567 = vmatprep.subr.mxu0 0.0
        %568 = vmatpush1.msra.mxu0 0.0
        %569 = vmatprep.subr.mxu0 0.0
        %570 = vmatpush1.msra.mxu0 0.0
        %571 = vmatprep.subr.mxu0 0.0
        %572 = vmatpush1.msra.mxu0 0.0
        %573 = vmatprep.subr.mxu0 0.0
        %574 = vmatpush1.msra.mxu0 0.0
        %575 = vmatprep.subr.mxu0 0.0
        %576 = vmatpush1.msra.mxu0 0.0
        %577 = vmatprep.mubr.f32.mxu0 0.0
        %578 = vmatmul.mubr.f32.gmra.mrb[0].mxu0 %v508
        %v579 = vpop.f32.mrb[0].mxu0
        %v580 = vadd.f32 0.0, %v579
        %v581 = vpop.f32.mrb[0].mxu0
        %v582 = vadd.f32 0.0, %v581
        %583 = vmatprep.mubr.f32.mxu0 0.0
        %584 = vmatmul.mubr.f32.gmra.mrb[0].mxu0 %v511
        %v585 = vpop.f32.mrb[0].mxu0
        %v586 = vadd.f32 0.0, %v585
        %v587 = vpop.f32.mrb[0].mxu0
        %v588 = vadd.f32 0.0, %v587
        %589 = vdwg.mxu0
        %vm594 = vcmask 1043456
        %v595 = vrot.slane %v580, 4
        %v596 = vrot.slane %v582, 4
        %v597 = vrot.slane %v586, 4
        %v598 = vsel %vm594, %v595, %v597
        %v599 = vrot.slane %v588, 4
        %v600 = vsel %vm594, %v596, %v599
        %607 = vst [vmem:[%s390 + $0x10] sm:$0xf0] %v595
        %608 = vst [vmem:[%s390 + $0x18] sm:$0xf0] %v596
        %609 = vst [vmem:[%s390 + $0x20] sm:$0xff] %v598
        %610 = vst [vmem:[%s390 + $0x28] sm:$0xff] %v600
        %611 = vst [vmem:[%s390 + $0x30] sm:$0xf] %v597
        %612 = vst [vmem:[%s390 + $0x38] sm:$0xf] %v599
        %s613 = smul.u32 2, %s28
        %p614 = scmp.lt.s32.totalorder %s27, 1
        %s615 = scalar_select %p614, %s27, 1
        %p616 = scmp.lt.s32.totalorder %s613, 1
        %s617 = scalar_select %p616, %s613, 1
        %s618 = smul.addr %s615, 8
        %s619 = sadd.s32 %s617, %s618
        %s620 = smul.addr %s619, 8
        %s621 = scalar_lea.vmem %s5, %s620
        // Predicated region
        $region61: #{tpu_custom_call.1} parent=39 // pred_check
          %p622 = pneg %p187
        $region62: #{tpu_custom_call.1} parent=39 // pred_check_branch
          %624 = sbr.rel (%p622) target = $region64
        $region63: #{tpu_custom_call.1} parent=39 // pred_region
          %s625 = smul.u32 2, %s28
        $region64: #{tpu_custom_call.1} parent=39 // pred_fallthru
          _
      $region40: #{tpu_custom_call.1} parent=5 // pred_fallthru
        _
      %p626 = scmp.le.s32.totalorder 2, %s18
      // Predicated region
      $region65: #{tpu_custom_call.1} parent=5 // pred_check
        %p627 = pneg %p626
      $region66: #{tpu_custom_call.1} parent=5 // pred_check_branch
        %629 = sbr.rel (%p627) target = $region68
      $region67: #{tpu_custom_call.1} parent=5 // pred_region
        %s630 = ssub.s32 %s18, 2
        // Predicated region
        $region69: #{tpu_custom_call.1} parent=67 // pred_check
          %p631 = pneg %p193
        $region70: #{tpu_custom_call.1} parent=67 // pred_check_branch
          %633 = sbr.rel (%p631) target = $region72
        $region71: #{tpu_custom_call.1} parent=67 // pred_region
          %s634 = smul.u32 2, %s30
          %p635 = scmp.lt.s32.totalorder %s29, 1
          %s636 = scalar_select %p635, %s29, 1
          %p637 = scmp.lt.s32.totalorder %s634, 1
          %s638 = scalar_select %p637, %s634, 1
          %s639 = smul.addr %s636, 8
          %s640 = sadd.s32 %s638, %s639
          %s641 = smul.addr %s640, 8
          %s642 = scalar_lea.vmem %s5, %s641
        $region72: #{tpu_custom_call.1} parent=67 // pred_fallthru
          _
      $region68: #{tpu_custom_call.1} parent=5 // pred_fallthru
        _
    $region6: #{tpu_custom_call.1} parent=1 // loop_footer
      %s22 = sadd.s32 1, %s18
    $region7: #{tpu_custom_call.1} parent=1 // loop_footer_branch
      %17 = sbr.rel target = $region3
    $region8: #{tpu_custom_call.1} parent=1 // loop_exit
      _
    %643 = vsyncpa [#allocation3], 1
    %s644 = scalar_lea.sflag [#allocation3], 1
    %645 = vsyncpa %s644, 1
    %646 = vsyncpa [#allocation5], 1
    %s647 = scalar_lea.sflag [#allocation5], 1
    %648 = vsyncpa %s647, 1
    %649 = vsyncpa [#allocation8], 1

</llo_original>
